<compile_context>
chip_gen: v7x
topology: tpu7x:2x2x1
jax: 0.10.0
libtpu: 0.0.40
codegen_flags: <defaults>
</compile_context>

<pallas_src>
import functools

import jax
import jax.numpy as jnp
from jax import lax
from jax.experimental import pallas as pl
from jax.experimental.pallas import tpu as pltpu


_STATIC_UNROLL_MAX = 8              # <= this many sublane chunks: fully static unroll
_FORI_UNROLL = 4                    # partial unroll for long chunk loops
_VMEM_LIMIT_CAP = 80 * 1024 * 1024  # never ask for more than 80 MiB scoped VMEM
_VMEM_FALLBACK = 64 * 1024 * 1024   # assume v7x-sized VMEM if the query fails


# --------------------------------------------------------------------------- #
# VMEM budgeting / tile selection
# --------------------------------------------------------------------------- #
def _query_vmem_bytes():
    try:
        info = pltpu.get_tpu_info()
    except Exception:
        return None
    for attr in ("vmem_capacity_bytes", "vmem_size_bytes", "vmem_bytes"):
        val = getattr(info, attr, None)
        if isinstance(val, int) and val > 0:
            return val
    return None


def _vmem_budget():
    """Returns (block budget, scoped vmem limit) in bytes, derived from the chip."""
    vmem = _query_vmem_bytes() or _VMEM_FALLBACK
    # 40 MiB limit on v7x (64 MiB physical), 80 MiB on v5e/v6e (128 MiB physical).
    limit = min((vmem * 5) // 8, _VMEM_LIMIT_CAP)
    budget = max(limit - 8 * 1024 * 1024, (limit * 3) // 4)
    return budget, limit


def _largest_tile(dim, unit, cap):
    """Largest multiple of `unit` that divides `dim` and is <= cap (>= unit)."""
    best = unit
    for d in range(unit, min(dim, int(cap)) + 1, unit):
        if dim % d == 0:
            best = d
    return best


def _choose_tiles(n, m, n_big_inputs, itemsize, chunk_rows, budget):
    """Pick (block_n, block_m) so everything VMEM-resident fits the budget."""

    def max_bn_for(bm):
        # acc (chunk_rows, bm) f32 + running max (1, bm) + output (1, bm) x2
        # + headroom for per-chunk f32 temporaries (a few (chunk_rows, bm)).
        fixed = 4 * bm * (chunk_rows + 3) + 8 * chunk_rows * bm * 4
        per_row = n_big_inputs * 2 * bm * itemsize          # 2x: double buffering
        avail = budget - fixed
        return 0 if avail < per_row else avail // per_row

    candidates = []
    if m % 128 == 0 and m >= 256:
        # Prefer >=2 blocks along the parallel lane axis: lets v7x shard the
        # grid across its two TensorCores; nearly free on single-core chips.
        candidates.append(_largest_tile(m, 128, m // 2))
    candidates.append(m)                                    # full-width fallback
    if m % 128 == 0:
        for cap in (8192, 4096, 2048, 1024, 512, 256, 128):
            c = _largest_tile(m, 128, cap)
            if c < m and c not in candidates:
                candidates.append(c)

    for bm in candidates:
        cap_bn = max_bn_for(bm)
        if cap_bn < 1:
            continue
        if n <= cap_bn:
            return n, bm                                    # whole reduction resident
        if cap_bn >= chunk_rows and n % chunk_rows == 0:
            bn = _largest_tile(n, chunk_rows, cap_bn)
            if bn >= chunk_rows:
                return bn, bm
    if n % chunk_rows != 0:
        raise ValueError(
            f"batch dim must be a multiple of {chunk_rows} (dtype sublane "
            "packing) when it does not fit in a single VMEM block")
    # Last resort: minimal legal tiles (compiler complains if still too big).
    return chunk_rows, (128 if m % 128 == 0 else m)


# --------------------------------------------------------------------------- #
# Kernel bodies
# --------------------------------------------------------------------------- #
def _update_chunk(z, m_ref, acc_ref):
    """Stabilized accumulate of one (r, bm) chunk of z = -a*(x - t).

    m_ref   (1, bm)          running per-lane max of z
    acc_ref (chunk_rows, bm) sublane-partial sums of exp(z - m)
    The cross-sublane (XLU) reduce is deferred to the epilogue.
    """
    m_old = m_ref[...]
    m_new = jnp.maximum(m_old, jnp.max(z, axis=0, keepdims=True))
    scale = jnp.exp(m_old - m_new)          # (1, bm), broadcasts over sublanes
    m_ref[...] = m_new
    e = jnp.exp(z - m_new)
    if z.shape[0] == acc_ref.shape[0]:
        acc_ref[...] = acc_ref[...] * scale + e
    else:
        # Remainder chunk (fewer rows than the accumulator): fold into row 0.
        acc_ref[...] = acc_ref[...] * scale
        acc_ref[0:1, :] = acc_ref[0:1, :] + jnp.sum(e, axis=0, keepdims=True)


def _reduce_block(load_z, bn, chunk_rows, m_ref, acc_ref):
    """Accumulate all `bn` rows of the current block, chunk_rows at a time."""
    num_chunks = bn // chunk_rows
    rem = bn - num_chunks * chunk_rows
    if num_chunks > 0:
        if num_chunks <= _STATIC_UNROLL_MAX:
            for j in range(num_chunks):
                _update_chunk(load_z(j * chunk_rows, chunk_rows), m_ref, acc_ref)
        else:
            def body(j, carry):
                start = pl.multiple_of(j * chunk_rows, chunk_rows)
                _update_chunk(load_z(start, chunk_rows), m_ref, acc_ref)
                return carry
            lax.fori_loop(0, num_chunks, body, 0, unroll=_FORI_UNROLL)
    if rem > 0:
        _update_chunk(load_z(num_chunks * chunk_rows, rem), m_ref, acc_ref)


def _init_scratch(m_ref, acc_ref):
    m_ref[...] = jnp.full(m_ref.shape, -jnp.inf, m_ref.dtype)
    acc_ref[...] = jnp.zeros(acc_ref.shape, acc_ref.dtype)


def _finalize(o_ref, m_ref, acc_ref, a, inv_n, t_shift):
    total = jnp.sum(acc_ref[...], axis=0, keepdims=True)    # one XLU reduce per tile
    res = (m_ref[...] + jnp.log(total * inv_n)) * (1.0 / a) + t_shift
    o_ref[...] = res.astype(o_ref.dtype)


def _erm_kernel_scalar_target(x_ref, o_ref, m_ref, acc_ref, *,
                              a, t, inv_n, chunk_rows):
    """Scalar target folded out of the stream: z = -a*x, epilogue adds +t."""
    k = pl.program_id(1)

    @pl.when(k == 0)
    def _init():
        _init_scratch(m_ref, acc_ref)

    def load_z(start, rows):
        return (-a) * x_ref[pl.ds(start, rows), :].astype(jnp.float32)

    _reduce_block(load_z, x_ref.shape[0], chunk_rows, m_ref, acc_ref)

    @pl.when(k == pl.num_programs(1) - 1)
    def _finish():
        _finalize(o_ref, m_ref, acc_ref, a, inv_n, t)


def _erm_kernel_row_target(x_ref, t_ref, o_ref, m_ref, acc_ref, *,
                           a, inv_n, chunk_rows):
    """Target constant along N, streamed as a (1, bm) row block."""
    k = pl.program_id(1)

    @pl.when(k == 0)
    def _init():
        _init_scratch(m_ref, acc_ref)

    at = a * t_ref[...].astype(jnp.float32)                 # hoisted once per block

    def load_z(start, rows):
        return at - a * x_ref[pl.ds(start, rows), :].astype(jnp.float32)

    _reduce_block(load_z, x_ref.shape[0], chunk_rows, m_ref, acc_ref)

    @pl.when(k == pl.num_programs(1) - 1)
    def _finish():
        _finalize(o_ref, m_ref, acc_ref, a, inv_n, 0.0)


def _erm_kernel_full_target(x_ref, t_ref, o_ref, m_ref, acc_ref, *,
                            a, inv_n, chunk_rows):
    """Genuinely per-sample (N, M) target streamed alongside the input."""
    k = pl.program_id(1)

    @pl.when(k == 0)
    def _init():
        _init_scratch(m_ref, acc_ref)

    def load_z(start, rows):
        xv = x_ref[pl.ds(start, rows), :].astype(jnp.float32)
        tv = t_ref[pl.ds(start, rows), :].astype(jnp.float32)
        return (-a) * (xv - tv)

    _reduce_block(load_z, x_ref.shape[0], chunk_rows, m_ref, acc_ref)

    @pl.when(k == pl.num_programs(1) - 1)
    def _finish():
        _finalize(o_ref, m_ref, acc_ref, a, inv_n, 0.0)


# --------------------------------------------------------------------------- #
# Wrapper
# --------------------------------------------------------------------------- #
def entropic_risk_measure(x, target=0.0, *, a=1.0, block_n=None, block_m=None):
    """Pallas implementation of EntropicRiskMeasure(a).forward(x, target).

    x:      (N, *) float array
    target: python scalar or array broadcastable to x
    returns array of shape (*)
    """
    a = float(a)
    if not a > 0:
        raise ValueError("Risk aversion coefficient should be positive.")
    x = jnp.asarray(x)
    n = x.shape[0]
    trailing = x.shape[1:]
    x2 = x.reshape(n, -1)
    m = x2.shape[1]
    inv_n = 1.0 / float(n)
    itemsize = int(x2.dtype.itemsize)
    out_dtype = x2.dtype if jnp.issubdtype(x2.dtype, jnp.floating) else jnp.float32
    # Sub-32-bit dtypes pack along sublanes -> coarser row granularity.
    chunk_rows = 8 * max(1, 4 // itemsize)

    # ---- classify the target -----------------------------------------------
    mode, t_scalar, t_row, t_full = "scalar", 0.0, None, None
    if isinstance(target, (int, float)):
        t_scalar = float(target)
    else:
        t_arr = jnp.asarray(target)
        if t_arr.ndim == 0:
            mode, t_row = "row", jnp.broadcast_to(t_arr, (1, m))
        elif t_arr.ndim < x.ndim or t_arr.shape[0] == 1:
            # Constant along the batch/reduction axis: stream a single row.
            mode = "row"
            t_row = jnp.broadcast_to(t_arr, (1,) + trailing).reshape(1, m)
        else:
            mode = "full"
            t_full = jnp.broadcast_to(t_arr, x.shape).reshape(n, m)

    n_big_inputs = 2 if mode == "full" else 1
    budget, vmem_limit = _vmem_budget()
    auto_bn, auto_bm = _choose_tiles(n, m, n_big_inputs, itemsize, chunk_rows, budget)
    bn = int(block_n) if block_n is not None else auto_bn
    bm = int(block_m) if block_m is not None else auto_bm
    if n % bn != 0 or m % bm != 0:
        raise ValueError("block sizes must divide the (flattened) input shape")
    if bn < n and bn % chunk_rows != 0:
        raise ValueError(f"block_n must be a multiple of {chunk_rows} "
                         "(or the full batch dim)")
    if bm < m and bm % 128 != 0:
        raise ValueError("block_m must be a multiple of 128 (or the full feature dim)")

    grid = (m // bm, n // bn)                        # reduction (N) axis last
    in_specs = [pl.BlockSpec((bn, bm), lambda i, k: (k, i))]
    operands = [x2]
    if mode == "scalar":
        kernel = functools.partial(_erm_kernel_scalar_target, a=a, t=t_scalar,
                                   inv_n=inv_n, chunk_rows=chunk_rows)
        bytes_in = n * m * itemsize
    elif mode == "row":
        in_specs.append(pl.BlockSpec((1, bm), lambda i, k: (0, i)))
        operands.append(t_row)
        kernel = functools.partial(_erm_kernel_row_target, a=a, inv_n=inv_n,
                                   chunk_rows=chunk_rows)
        bytes_in = n * m * itemsize + m * int(t_row.dtype.itemsize)
    else:
        in_specs.append(pl.BlockSpec((bn, bm), lambda i, k: (k, i)))
        operands.append(t_full)
        kernel = functools.partial(_erm_kernel_full_target, a=a, inv_n=inv_n,
                                   chunk_rows=chunk_rows)
        bytes_in = n * m * (itemsize + int(t_full.dtype.itemsize))

    grid_spec = pltpu.PrefetchScalarGridSpec(
        num_scalar_prefetch=0,
        grid=grid,
        in_specs=in_specs,
        out_specs=pl.BlockSpec((1, bm), lambda i, k: (0, i)),
        scratch_shapes=[pltpu.VMEM((1, bm), jnp.float32),           # running max
                        pltpu.VMEM((chunk_rows, bm), jnp.float32)],  # partial sums
    )

    out = pl.pallas_call(
        kernel,
        out_shape=jax.ShapeDtypeStruct((1, m), out_dtype),
        grid_spec=grid_spec,
        compiler_params=pltpu.CompilerParams(
            dimension_semantics=("parallel", "arbitrary"),
            vmem_limit_bytes=int(vmem_limit)),
        cost_estimate=pl.CostEstimate(
            flops=int(6 * n * m),
            transcendentals=int(n * m),
            bytes_accessed=int(bytes_in + m * jnp.dtype(out_dtype).itemsize)),
    )(*operands)
    return out[0].reshape(trailing)


def entropic_risk_measure_ref(x, target=0.0, *, a=1.0):
    """Pure-JAX f32 reference: (logsumexp(-a*(x-t), 0) - log N) / a."""
    x = jnp.asarray(x, dtype=jnp.float32)
    t = jnp.asarray(target, dtype=jnp.float32)
    z = ((-a) * (x - t)).reshape(x.shape[0], -1)
    out = (jax.scipy.special.logsumexp(z, axis=0) - jnp.log(float(x.shape[0]))) / a
    return out.reshape(x.shape[1:])


# TODO(synk): HedgeLoss.cash (bisection-based certainty equivalent) is not
# implemented; only the forward pass of EntropicRiskMeasure is kernelized.


if __name__ == "__main__":
    key = jax.random.PRNGKey(0)
    kx, kt, k2, k3 = jax.random.split(key, 4)

    # 1) full (N, M) array target
    N, M, a = 16, 256, 1.5
    x = jax.random.normal(kx, (N, M), dtype=jnp.float32) * 0.5
    target = jax.random.normal(kt, (N, M), dtype=jnp.float32) * 0.1
    out = jax.block_until_ready(entropic_risk_measure(x, target, a=a))
    ref = entropic_risk_measure_ref(x, target, a=a)
    assert out.shape == (M,)
    assert jnp.allclose(out, ref, rtol=1e-4, atol=1e-5), (
        f"max abs err = {jnp.max(jnp.abs(out - ref))}")

    # 2) default scalar target: folded into the epilogue, no target HBM traffic
    out0 = jax.block_until_ready(entropic_risk_measure(x, 0.0, a=a))
    ref0 = entropic_risk_measure_ref(x, 0.0, a=a)
    assert jnp.allclose(out0, ref0, rtol=1e-4, atol=1e-5)

    # 3) numerical stability: large-magnitude P&L, larger risk aversion
    xb = jax.random.normal(k2, (N, M), dtype=jnp.float32) * 20.0
    outb = jax.block_until_ready(entropic_risk_measure(xb, 0.0, a=2.0))
    refb = entropic_risk_measure_ref(xb, 0.0, a=2.0)
    assert jnp.all(jnp.isfinite(outb))
    assert jnp.allclose(outb, refb, rtol=1e-4, atol=1e-4)

    # 4) trailing-shape input (N, A, B) with target constant along N -> row path
    x3 = jax.random.normal(kx, (16, 4, 32), dtype=jnp.float32) * 0.3
    t3 = jax.random.normal(kt, (4, 32), dtype=jnp.float32) * 0.1
    out3 = jax.block_until_ready(entropic_risk_measure(x3, t3, a=0.7))
    ref3 = entropic_risk_measure_ref(x3, t3, a=0.7)
    assert out3.shape == (4, 32)
    assert jnp.allclose(out3, ref3, rtol=1e-4, atol=1e-5)

    # 5) larger batch: auto tiles take the fori_loop chunk path (16 chunks)
    xl = jax.random.normal(k3, (128, 256), dtype=jnp.float32)
    outl = jax.block_until_ready(entropic_risk_measure(xl, 0.0, a=1.0))
    refl = entropic_risk_measure_ref(xl, 0.0, a=1.0)
    assert jnp.allclose(outl, refl, rtol=1e-4, atol=1e-5)

    # 6) explicit small tiles: multi-grid-step reduction with cross-step rescale
    outt = jax.block_until_ready(
        entropic_risk_measure(xl, 0.0, a=1.0, block_n=32, block_m=128))
    assert jnp.allclose(outt, refl, rtol=1e-4, atol=1e-5)

    # 7) bf16 input: dtype-aware 16-row sublane chunks, bf16 output
    xh = (jax.random.normal(k2, (32, 256), dtype=jnp.float32) * 0.5).astype(jnp.bfloat16)
    outh = jax.block_until_ready(entropic_risk_measure(xh, 0.0, a=1.0))
    assert outh.dtype == jnp.bfloat16
    refh = entropic_risk_measure_ref(xh.astype(jnp.float32), 0.0, a=1.0)
    assert jnp.allclose(outh.astype(jnp.float32), refh, rtol=5e-2, atol=5e-2)

    print("KERNEL_OK")
</pallas_src>

<mosaic_0001>
module attributes {stable_mosaic.version = 11 : i64} {
  func.func @_erm_kernel_full_target(%arg0: i32, %arg1: i32, %arg2: memref<16x128xf32, #tpu.memory_space<vmem>>, %arg3: memref<16x128xf32, #tpu.memory_space<vmem>>, %arg4: memref<1x128xf32, #tpu.memory_space<vmem>>, %arg5: memref<1x128xf32, #tpu.memory_space<vmem>>, %arg6: memref<8x128xf32, #tpu.memory_space<vmem>>) attributes {dimension_semantics = [#tpu.dimension_semantics<parallel>, #tpu.dimension_semantics<arbitrary>], iteration_bounds = array<i64: 2, 1>, scalar_prefetch = 0 : i64, scratch_operands = 2 : i64, tpu.core_type = #tpu.core_type<tc>, window_params = [{transform_indices = @transform_0, window_bounds = array<i64: 16, 128>}, {transform_indices = @transform_1, window_bounds = array<i64: 16, 128>}, {transform_indices = @transform_2, window_bounds = array<i64: 1, 128>}]} {
    %c0_i32 = arith.constant 0 : i32
    %0 = arith.cmpi eq, %arg1, %c0_i32 : i32
    %1 = arith.extui %0 : i1 to i32
    %c0_i32_0 = arith.constant 0 : i32
    %2 = arith.cmpi ne, %1, %c0_i32_0 : i32
    scf.if %2 {
      %cst_28 = arith.constant 0xFF800000 : f32
      %46 = vector.broadcast %cst_28 : f32 to vector<1x128xf32>
      %c0_29 = arith.constant 0 : index
      %c0_30 = arith.constant 0 : index
      %47 = vector.load %arg5[%c0_29, %c0_30] : memref<1x128xf32, #tpu.memory_space<vmem>>, vector<1x128xf32>
      tpu.vector_store %arg5[%c0_29, %c0_30], %46 {strides = array<i32>} : memref<1x128xf32, #tpu.memory_space<vmem>>, vector<1x128xf32>,
      %cst_31 = arith.constant 0.000000e+00 : f32
      %48 = vector.broadcast %cst_31 : f32 to vector<8x128xf32>
      %c0_32 = arith.constant 0 : index
      %c0_33 = arith.constant 0 : index
      %49 = vector.load %arg6[%c0_32, %c0_33] : memref<8x128xf32, #tpu.memory_space<vmem>>, vector<8x128xf32>
      tpu.vector_store %arg6[%c0_32, %c0_33], %48 {strides = array<i32>} : memref<8x128xf32, #tpu.memory_space<vmem>>, vector<8x128xf32>,
    } else {
    }
    %c0 = arith.constant 0 : index
    %c0_1 = arith.constant 0 : index
    %3 = vector.load %arg2[%c0, %c0_1] : memref<16x128xf32, #tpu.memory_space<vmem>>, vector<8x128xf32>
    %c0_2 = arith.constant 0 : index
    %c0_3 = arith.constant 0 : index
    %4 = vector.load %arg3[%c0_2, %c0_3] : memref<16x128xf32, #tpu.memory_space<vmem>>, vector<8x128xf32>
    %5 = arith.subf %3, %4 : vector<8x128xf32>
    %cst = arith.constant -1.500000e+00 : f32
    %6 = vector.broadcast %cst : f32 to vector<8x128xf32>
    %7 = arith.mulf %6, %5 : vector<8x128xf32>
    %c0_4 = arith.constant 0 : index
    %c0_5 = arith.constant 0 : index
    %8 = vector.load %arg5[%c0_4, %c0_5] : memref<1x128xf32, #tpu.memory_space<vmem>>, vector<1x128xf32>
    %cst_6 = arith.constant dense<0xFF800000> : vector<128xf32>
    %9 = vector.multi_reduction <maximumf>, %7, %cst_6 [0] : vector<8x128xf32> to vector<128xf32>
    %10 = vector.shape_cast %9 : vector<128xf32> to vector<1x128xf32>
    %11 = arith.maximumf %8, %10 : vector<1x128xf32>
    %12 = arith.subf %8, %11 : vector<1x128xf32>
    %13 = math.exp %12 : vector<1x128xf32>
    %c0_7 = arith.constant 0 : index
    %c0_8 = arith.constant 0 : index
    %14 = vector.load %arg5[%c0_7, %c0_8] : memref<1x128xf32, #tpu.memory_space<vmem>>, vector<1x128xf32>
    tpu.vector_store %arg5[%c0_7, %c0_8], %11 {strides = array<i32>} : memref<1x128xf32, #tpu.memory_space<vmem>>, vector<1x128xf32>,
    %15 = vector.broadcast %11 : vector<1x128xf32> to vector<8x128xf32>
    %16 = arith.subf %7, %15 : vector<8x128xf32>
    %17 = math.exp %16 : vector<8x128xf32>
    %c0_9 = arith.constant 0 : index
    %c0_10 = arith.constant 0 : index
    %18 = vector.load %arg6[%c0_9, %c0_10] : memref<8x128xf32, #tpu.memory_space<vmem>>, vector<8x128xf32>
    %19 = vector.broadcast %13 : vector<1x128xf32> to vector<8x128xf32>
    %20 = arith.mulf %18, %19 : vector<8x128xf32>
    %21 = arith.addf %20, %17 : vector<8x128xf32>
    %c0_11 = arith.constant 0 : index
    %c0_12 = arith.constant 0 : index
    %22 = vector.load %arg6[%c0_11, %c0_12] : memref<8x128xf32, #tpu.memory_space<vmem>>, vector<8x128xf32>
    tpu.vector_store %arg6[%c0_11, %c0_12], %21 {strides = array<i32>} : memref<8x128xf32, #tpu.memory_space<vmem>>, vector<8x128xf32>,
    %c8 = arith.constant 8 : index
    %c0_13 = arith.constant 0 : index
    %23 = vector.load %arg2[%c8, %c0_13] : memref<16x128xf32, #tpu.memory_space<vmem>>, vector<8x128xf32>
    %c8_14 = arith.constant 8 : index
    %c0_15 = arith.constant 0 : index
    %24 = vector.load %arg3[%c8_14, %c0_15] : memref<16x128xf32, #tpu.memory_space<vmem>>, vector<8x128xf32>
    %25 = arith.subf %23, %24 : vector<8x128xf32>
    %cst_16 = arith.constant -1.500000e+00 : f32
    %26 = vector.broadcast %cst_16 : f32 to vector<8x128xf32>
    %27 = arith.mulf %26, %25 : vector<8x128xf32>
    %c0_17 = arith.constant 0 : index
    %c0_18 = arith.constant 0 : index
    %28 = vector.load %arg5[%c0_17, %c0_18] : memref<1x128xf32, #tpu.memory_space<vmem>>, vector<1x128xf32>
    %cst_19 = arith.constant dense<0xFF800000> : vector<128xf32>
    %29 = vector.multi_reduction <maximumf>, %27, %cst_19 [0] : vector<8x128xf32> to vector<128xf32>
    %30 = vector.shape_cast %29 : vector<128xf32> to vector<1x128xf32>
    %31 = arith.maximumf %28, %30 : vector<1x128xf32>
    %32 = arith.subf %28, %31 : vector<1x128xf32>
    %33 = math.exp %32 : vector<1x128xf32>
    %c0_20 = arith.constant 0 : index
    %c0_21 = arith.constant 0 : index
    %34 = vector.load %arg5[%c0_20, %c0_21] : memref<1x128xf32, #tpu.memory_space<vmem>>, vector<1x128xf32>
    tpu.vector_store %arg5[%c0_20, %c0_21], %31 {strides = array<i32>} : memref<1x128xf32, #tpu.memory_space<vmem>>, vector<1x128xf32>,
    %35 = vector.broadcast %31 : vector<1x128xf32> to vector<8x128xf32>
    %36 = arith.subf %27, %35 : vector<8x128xf32>
    %37 = math.exp %36 : vector<8x128xf32>
    %c0_22 = arith.constant 0 : index
    %c0_23 = arith.constant 0 : index
    %38 = vector.load %arg6[%c0_22, %c0_23] : memref<8x128xf32, #tpu.memory_space<vmem>>, vector<8x128xf32>
    %39 = vector.broadcast %33 : vector<1x128xf32> to vector<8x128xf32>
    %40 = arith.mulf %38, %39 : vector<8x128xf32>
    %41 = arith.addf %40, %37 : vector<8x128xf32>
    %c0_24 = arith.constant 0 : index
    %c0_25 = arith.constant 0 : index
    %42 = vector.load %arg6[%c0_24, %c0_25] : memref<8x128xf32, #tpu.memory_space<vmem>>, vector<8x128xf32>
    tpu.vector_store %arg6[%c0_24, %c0_25], %41 {strides = array<i32>} : memref<8x128xf32, #tpu.memory_space<vmem>>, vector<8x128xf32>,
    %c0_i32_26 = arith.constant 0 : i32
    %43 = arith.cmpi eq, %arg1, %c0_i32_26 : i32
    %44 = arith.extui %43 : i1 to i32
    %c0_i32_27 = arith.constant 0 : i32
    %45 = arith.cmpi ne, %44, %c0_i32_27 : i32
    scf.if %45 {
      %c0_28 = arith.constant 0 : index
      %c0_29 = arith.constant 0 : index
      %46 = vector.load %arg6[%c0_28, %c0_29] : memref<8x128xf32, #tpu.memory_space<vmem>>, vector<8x128xf32>
      %cst_30 = arith.constant dense<0.000000e+00> : vector<128xf32>
      %47 = vector.multi_reduction <add>, %46, %cst_30 [0] : vector<8x128xf32> to vector<128xf32>
      %48 = vector.shape_cast %47 : vector<128xf32> to vector<1x128xf32>
      %c0_31 = arith.constant 0 : index
      %c0_32 = arith.constant 0 : index
      %49 = vector.load %arg5[%c0_31, %c0_32] : memref<1x128xf32, #tpu.memory_space<vmem>>, vector<1x128xf32>
      %cst_33 = arith.constant 6.250000e-02 : f32
      %50 = vector.broadcast %cst_33 : f32 to vector<1x128xf32>
      %51 = arith.mulf %48, %50 : vector<1x128xf32>
      %52 = math.log %51 : vector<1x128xf32>
      %53 = arith.addf %49, %52 : vector<1x128xf32>
      %cst_34 = arith.constant 0.666666686 : f32
      %54 = vector.broadcast %cst_34 : f32 to vector<1x128xf32>
      %55 = arith.mulf %53, %54 : vector<1x128xf32>
      %cst_35 = arith.constant 0.000000e+00 : f32
      %56 = vector.broadcast %cst_35 : f32 to vector<1x128xf32>
      %57 = arith.addf %55, %56 : vector<1x128xf32>
      %c0_36 = arith.constant 0 : index
      %c0_37 = arith.constant 0 : index
      %58 = vector.load %arg4[%c0_36, %c0_37] : memref<1x128xf32, #tpu.memory_space<vmem>>, vector<1x128xf32>
      tpu.vector_store %arg4[%c0_36, %c0_37], %57 {strides = array<i32>} : memref<1x128xf32, #tpu.memory_space<vmem>>, vector<1x128xf32>,
    } else {
    }
    return
  }
  func.func @transform_0(%arg0: i32, %arg1: i32) -> (i32, i32) {
    %c0_i32 = arith.constant 0 : i32
    return %arg1, %arg0 : i32, i32
  }
  func.func @transform_1(%arg0: i32, %arg1: i32) -> (i32, i32) {
    %c0_i32 = arith.constant 0 : i32
    return %arg1, %arg0 : i32, i32
  }
  func.func @transform_2(%arg0: i32, %arg1: i32) -> (i32, i32) {
    %c0_i32 = arith.constant 0 : i32
    %c0_i32_0 = arith.constant 0 : i32
    return %c0_i32, %arg0 : i32, i32
  }
}

</mosaic_0001>

<llo_original>
// kernel: tpu_custom_call.1
$region0: #{tpu_custom_call.1}
  #allocation0 [shape = 'u32[]', space=smem, size = 0x4, offset = 0x4, fixed_abs, tag = 'smem constant byte address 0x4 - core index']
  #allocation1 [shape = 'u32[144,128]{1,0:T(1,128)}', space=vmem, size = 0x12000, scoped, tag = 'internal scratch']
  #allocation2 [shape = 'f32[1,128]{1,0:T(1,128)}', space=vmem, size = 0x200, scoped, tag = 'scratch operand']
  #allocation3 [shape = 'f32[8,128]{1,0:T(8,128)}', space=vmem, size = 0x1000, scoped, tag = 'scratch operand']
  %s0 = inlined_call_operand.hbm [shape: f32[16,256], index: 0, kind: input, shape index: {}]
  %s1 = inlined_call_operand.hbm [shape: f32[16,256], index: 1, kind: input, shape index: {}]
  %s2 = inlined_call_operand.hbm [shape: f32[1,256], index: 2, kind: output, shape index: {}]
  %s3 = sld [smem:[#allocation0]]
  $region57: #{tpu_custom_call.1} parent=0
    _
  %s5 = ssub.s32 1, %s3
  %s6 = scalar_select 0, %s5, %s3
  $region1: #{tpu_custom_call.1} parent=0
    #allocation4 [shape = 'u8[16384]{0}', space=vmem, size = 0x4000, scoped, tag = 'input window, operand 0']
    #allocation5 [shape = 's32[2]{0}', space=sflag, size = 0x8, scoped, tag = 'scoped memory for tpu_custom_call.1']
    #allocation6 [shape = 's32[2]{0}', space=sflag, size = 0x8, scoped, tag = 'scoped memory for tpu_custom_call.1']
    #allocation7 [shape = 'u8[16384]{0}', space=vmem, size = 0x4000, scoped, tag = 'input window, operand 1']
    #allocation8 [shape = 's32[2]{0}', space=sflag, size = 0x8, scoped, tag = 'scoped memory for tpu_custom_call.1']
    #allocation9 [shape = 'u8[1024]{0}', space=vmem, size = 0x400, scoped, tag = 'output window, operand 0']
    %7 = vsyncpa [#allocation5], 0
    %s8 = scalar_lea.sflag [#allocation5], 1
    %9 = vsyncpa %s8, 0
    %10 = vsyncpa [#allocation8], 0
    %s11 = scalar_lea.sflag [#allocation8], 1
    %12 = vsyncpa %s11, 0
    %13 = vsyncpa [#allocation6], 0
    %s14 = scalar_lea.sflag [#allocation6], 1
    %15 = vsyncpa %s14, 0
    loop: start=0, step=1, limit=4
    $region2: #{tpu_custom_call.1} parent=1 // loop_pre_header
      _
    $region3: #{tpu_custom_call.1} parent=1 // loop_header
      %s17 = sphi 0, %s21
      %p18 = scmp.ge.s32.totalorder %s17, 4
      %s24 = sphi 0, %s36
      %s25 = sphi 0, %s32
      %s26 = sphi 0, %s24
      %s27 = sphi 0, %s25
      %s28 = sphi 0, %s26
      %s29 = sphi 0, %s27
      %s41 = sphi 0, %s43
      %s44 = sphi 0, %s41
      %s45 = sphi 0, %s44
      %s61 = sphi 0, %s45
      %s69 = sphi 0, %s71
      %s72 = sphi 0, %s69
      %s73 = sphi 0, %s72
      %s89 = sphi 0, %s73
      %s95 = sphi 0, %s97
      %s98 = sphi 0, %s95
      %s99 = sphi 0, %s98
      %s115 = sphi 0, %s99
    $region4: #{tpu_custom_call.1} parent=1 // loop_header_branch
      %20 = sbr.rel (%p18) target = $region8
    $region5: #{tpu_custom_call.1} parent=1 // loop_body
      %s22 = ssub.s32 %s17, 1
      %s23 = ssub.s32 %s17, 2
      %s30 = sadd.s32 1, %s25
      %p31 = scmp.ge.s32.totalorder %s30, 1
      %s32 = scalar_select %p31, 0, %s30
      %s33 = sadd.s32 1, %s24
      %s34 = scalar_select %p31, %s33, %s24
      %p35 = scmp.ge.s32.totalorder %s34, 2
      %s36 = scalar_select %p35, 0, %s34
      %s37 = ssub.s32 %s25, %s32
      %s38 = ssub.s32 %s24, %s36
      %s39 = sor.u32 %s37, %s38
      %p40 = scmp.eq.s32.totalorder %s39, 0
      %s42 = sadd.s32 %s41, 1
      %s43 = scalar_select %p40, %s41, %s42
      %p46 = pneg %p40
      %p47 = scmp.eq.s32.totalorder %s17, 1
      %p48 = por %p46, %p47
      %p49 = scmp.ne.s32.totalorder %s41, %s44
      %p50 = scmp.eq.s32.totalorder %s17, 0
      %p51 = por %p49, %p50
      %p52 = scmp.ne.s32.totalorder %s41, %s44
      %p53 = scmp.eq.s32.totalorder %s22, 1
      %p54 = por %p52, %p53
      %p55 = scmp.ne.s32.totalorder %s44, %s45
      %p56 = scmp.eq.s32.totalorder %s22, 0
      %p57 = por %p55, %p56
      %p58 = scmp.ne.s32.totalorder %s44, %s45
      %p59 = scmp.eq.s32.totalorder %s23, 1
      %p60 = por %p58, %p59
      %p62 = scmp.ne.s32.totalorder %s45, %s61
      %p63 = scmp.eq.s32.totalorder %s23, 0
      %p64 = por %p62, %p63
      %s65 = ssub.s32 %s25, %s32
      %s66 = ssub.s32 %s24, %s36
      %s67 = sor.u32 %s65, %s66
      %p68 = scmp.eq.s32.totalorder %s67, 0
      %s70 = sadd.s32 %s69, 1
      %s71 = scalar_select %p68, %s69, %s70
      %p74 = pneg %p68
      %p75 = scmp.eq.s32.totalorder %s17, 1
      %p76 = por %p74, %p75
      %p77 = scmp.ne.s32.totalorder %s69, %s72
      %p78 = scmp.eq.s32.totalorder %s17, 0
      %p79 = por %p77, %p78
      %p80 = scmp.ne.s32.totalorder %s69, %s72
      %p81 = scmp.eq.s32.totalorder %s22, 1
      %p82 = por %p80, %p81
      %p83 = scmp.ne.s32.totalorder %s72, %s73
      %p84 = scmp.eq.s32.totalorder %s22, 0
      %p85 = por %p83, %p84
      %p86 = scmp.ne.s32.totalorder %s72, %s73
      %p87 = scmp.eq.s32.totalorder %s23, 1
      %p88 = por %p86, %p87
      %p90 = scmp.ne.s32.totalorder %s73, %s89
      %p91 = scmp.eq.s32.totalorder %s23, 0
      %p92 = por %p90, %p91
      %s93 = ssub.s32 %s24, %s36
      %p94 = scmp.eq.s32.totalorder %s93, 0
      %s96 = sadd.s32 %s95, 1
      %s97 = scalar_select %p94, %s95, %s96
      %p100 = pneg %p94
      %p101 = scmp.eq.s32.totalorder %s17, 1
      %p102 = por %p100, %p101
      %p103 = scmp.ne.s32.totalorder %s95, %s98
      %p104 = scmp.eq.s32.totalorder %s17, 0
      %p105 = por %p103, %p104
      %p106 = scmp.ne.s32.totalorder %s95, %s98
      %p107 = scmp.eq.s32.totalorder %s22, 1
      %p108 = por %p106, %p107
      %p109 = scmp.ne.s32.totalorder %s98, %s99
      %p110 = scmp.eq.s32.totalorder %s22, 0
      %p111 = por %p109, %p110
      %p112 = scmp.ne.s32.totalorder %s98, %s99
      %p113 = scmp.eq.s32.totalorder %s23, 1
      %p114 = por %p112, %p113
      %p116 = scmp.ne.s32.totalorder %s99, %s115
      %p117 = scmp.eq.s32.totalorder %s23, 0
      %p118 = por %p116, %p117
      %p119 = scmp.le.s32.totalorder 1, %s17
      %p120 = scmp.lt.s32.totalorder %s17, 3
      %p121 = pnand %p119, %p120
      %p122 = pneg %p121
      // Predicated region
      $region9: #{tpu_custom_call.1} parent=5 // pred_check
        _
      $region10: #{tpu_custom_call.1} parent=5 // pred_check_branch
        %124 = sbr.rel (%p121) target = $region12
      $region11: #{tpu_custom_call.1} parent=5 // pred_region
        %s125 = ssub.s32 %s17, 1
      $region12: #{tpu_custom_call.1} parent=5 // pred_fallthru
        _
      %p126 = scmp.lt.s32.totalorder %s17, 2
      // Predicated region
      $region13: #{tpu_custom_call.1} parent=5 // pred_check
        %p127 = pneg %p126
      $region14: #{tpu_custom_call.1} parent=5 // pred_check_branch
        %129 = sbr.rel (%p127) target = $region16
      $region15: #{tpu_custom_call.1} parent=5 // pred_region
        // Predicated region
        $region17: #{tpu_custom_call.1} parent=15 // pred_check
          %p130 = pneg %p51
        $region18: #{tpu_custom_call.1} parent=15 // pred_check_branch
          %132 = sbr.rel (%p130) target = $region20
        $region19: #{tpu_custom_call.1} parent=15 // pred_region
          %s133 = sand.u32 %s41, 1
          %s134 = scalar_lea.sflag [#allocation5], %s133
          %s135 = sand.u32 %s41, 1
          %s136 = smul.addr %s135, 16
          %s137 = scalar_lea.vmem [#allocation4], %s136
          %s138 = smul.u32 2, %s25
          %s140 = ssub.s32 256, 256
          %141 = vsyncadd %s134, %s140
          %s142 = smul.addr %s138, 2
          %s143 = sadd.s32 %s24, %s142
          %s144 = smul.addr %s143, 128
          %s145 = scalar_lea.hbm %s0, %s144
          %s146 = sshll.u32 %s137, 4
          %s147 = int_to_ptr.vmem [resolvable:$true] %s146
          %152 = dma.hbm_to_vmem [thread:$0]  %s145, 256, %s147, %s134, 256, 128, 8
        $region20: #{tpu_custom_call.1} parent=15 // pred_fallthru
          _
        // Predicated region
        $region21: #{tpu_custom_call.1} parent=15 // pred_check
          %p153 = pneg %p79
        $region22: #{tpu_custom_call.1} parent=15 // pred_check_branch
          %155 = sbr.rel (%p153) target = $region24
        $region23: #{tpu_custom_call.1} parent=15 // pred_region
          %s156 = sand.u32 %s69, 1
          %s157 = scalar_lea.sflag [#allocation8], %s156
          %s158 = sand.u32 %s69, 1
          %s159 = smul.addr %s158, 16
          %s160 = scalar_lea.vmem [#allocation7], %s159
          %s161 = smul.u32 2, %s25
          %s163 = ssub.s32 256, 256
          %164 = vsyncadd %s157, %s163
          %s165 = smul.addr %s161, 2
          %s166 = sadd.s32 %s24, %s165
          %s167 = smul.addr %s166, 128
          %s168 = scalar_lea.hbm %s1, %s167
          %s169 = sshll.u32 %s160, 4
          %s170 = int_to_ptr.vmem [resolvable:$true] %s169
          %175 = dma.hbm_to_vmem [thread:$0]  %s168, 256, %s170, %s157, 256, 128, 8
        $region24: #{tpu_custom_call.1} parent=15 // pred_fallthru
          _
      $region16: #{tpu_custom_call.1} parent=5 // pred_fallthru
        _
      %p176 = scmp.le.s32.totalorder 1, %s17
      %p177 = scmp.lt.s32.totalorder %s17, 3
      %p178 = pnand %p176, %p177
      %p179 = pneg %p178
      // Predicated region
      $region25: #{tpu_custom_call.1} parent=5 // pred_check
        _
      $region26: #{tpu_custom_call.1} parent=5 // pred_check_branch
        %181 = sbr.rel (%p178) target = $region28
      $region27: #{tpu_custom_call.1} parent=5 // pred_region
        %s182 = ssub.s32 %s17, 1
        %s183 = sand.u32 %s44, 1
        %s184 = scalar_lea.sflag [#allocation5], %s183
        %s185 = sand.u32 %s44, 1
        %s186 = smul.addr %s185, 16
        %s187 = scalar_lea.vmem [#allocation4], %s186
        // Predicated region
        $region29: #{tpu_custom_call.1} parent=27 // pred_check
          %p188 = pneg %p57
        $region30: #{tpu_custom_call.1} parent=27 // pred_check_branch
          %190 = sbr.rel (%p188) target = $region32
        $region31: #{tpu_custom_call.1} parent=27 // pred_region
          %191 = dma.done %s184, 256
        $region32: #{tpu_custom_call.1} parent=27 // pred_fallthru
          _
        %s192 = sand.u32 %s72, 1
        %s193 = scalar_lea.sflag [#allocation8], %s192
        %s194 = sand.u32 %s72, 1
        %s195 = smul.addr %s194, 16
        %s196 = scalar_lea.vmem [#allocation7], %s195
        // Predicated region
        $region33: #{tpu_custom_call.1} parent=27 // pred_check
          %p197 = pneg %p85
        $region34: #{tpu_custom_call.1} parent=27 // pred_check_branch
          %199 = sbr.rel (%p197) target = $region36
        $region35: #{tpu_custom_call.1} parent=27 // pred_region
          %200 = dma.done %s193, 256
        $region36: #{tpu_custom_call.1} parent=27 // pred_fallthru
          _
        %s201 = sand.u32 %s44, 1
        %s202 = scalar_lea.sflag [#allocation5], %s201
        %s203 = sand.u32 %s44, 1
        %s204 = smul.addr %s203, 16
        %s205 = scalar_lea.vmem [#allocation4], %s204
        %p206 = pneg %p57
        %p207 = pneg %p54
        %s208 = sand.u32 %s72, 1
        %s209 = scalar_lea.sflag [#allocation8], %s208
        %s210 = sand.u32 %s72, 1
        %s211 = smul.addr %s210, 16
        %s212 = scalar_lea.vmem [#allocation7], %s211
        %p213 = pneg %p85
        %p214 = pneg %p82
        %p215 = pneg %p111
        %p216 = pneg %p108
        %s217 = sand.u32 %s98, 1
        %s218 = scalar_lea.sflag [#allocation6], %s217
        %s219 = sand.u32 %s98, 1
        %s220 = scalar_lea.vmem [#allocation9], %s219
        %s221 = smul.u32 2, %s27
        %s222 = smul.u32 2, %s27
        %p223 = scmp.eq.s32.totalorder %s27, 0
        // Predicated region
        $region37: #{tpu_custom_call.1} parent=27 // pred_check
          %p224 = pneg %p223
        $region38: #{tpu_custom_call.1} parent=27 // pred_check_branch
          %226 = sbr.rel (%p224) target = $region40
        $region39: #{tpu_custom_call.1} parent=27 // pred_region
          %227 = vst [vmem:[#allocation2] sm:$0x1] -inf
          %228 = vst [vmem:[#allocation3] sm:$0xff] 0.0
        $region40: #{tpu_custom_call.1} parent=27 // pred_fallthru
          _
        %v229 = vld [vmem:[%s187] sm:$0xff]
        %v230 = vld [vmem:[%s196] sm:$0xff]
        %v231 = vsub.f32 %v229, %v230
        %v232 = vmul.f32 %v231, -1.5
        %v233 = vld [vmem:[#allocation2] sm:$0x1]
        %v234 = vrot.slane %v232, 4
        %v235 = vmax.f32 %v232, %v234
        %v236 = vrot.slane %v235, 2
        %v237 = vmax.f32 %v235, %v236
        %v238 = vrot.slane %v237, 1
        %v239 = vmax.f32 %v237, %v238
        %v240 = vmax.f32 %v233, %v239
        %v241 = vsub.f32 %v233, %v240
        %v242 = vmul.f32 %v241, 1.442695
        %v243 = vpow.pop %v242
        %244 = vst [vmem:[#allocation2] sm:$0x1] %v240
        %v246 = vlaneseq
        %v247 = vshrl.u32 %v246, 7
        %v248 = vsub.s32 0, %v247
        %v249 = vrot.slane %v240, %v248
        %v251 = vsub.f32 %v232, %v249
        %v252 = vmul.f32 %v251, 1.442695
        %v253 = vpow.pop %v252
        %v254 = vld [vmem:[#allocation3] sm:$0xff]
        %v256 = vlaneseq
        %v257 = vshrl.u32 %v256, 7
        %v258 = vsub.s32 0, %v257
        %v259 = vrot.slane %v243, %v258
        %v261 = vmul.f32 %v254, %v259
        %v262 = vadd.f32 %v261, %v253
        %263 = vst [vmem:[#allocation3] sm:$0xff] %v262
        %v264 = vld [vmem:[%s187 + $0x8] sm:$0xff]
        %v265 = vld [vmem:[%s196 + $0x8] sm:$0xff]
        %v266 = vsub.f32 %v264, %v265
        %v267 = vmul.f32 %v266, -1.5
        %v268 = vld [vmem:[#allocation2] sm:$0x1]
        %v269 = vrot.slane %v267, 4
        %v270 = vmax.f32 %v267, %v269
        %v271 = vrot.slane %v270, 2
        %v272 = vmax.f32 %v270, %v271
        %v273 = vrot.slane %v272, 1
        %v274 = vmax.f32 %v272, %v273
        %v275 = vmax.f32 %v268, %v274
        %v276 = vsub.f32 %v268, %v275
        %v277 = vmul.f32 %v276, 1.442695
        %v278 = vpow.pop %v277
        %279 = vst [vmem:[#allocation2] sm:$0x1] %v275
        %v281 = vlaneseq
        %v282 = vshrl.u32 %v281, 7
        %v283 = vsub.s32 0, %v282
        %v284 = vrot.slane %v275, %v283
        %v286 = vsub.f32 %v267, %v284
        %v287 = vmul.f32 %v286, 1.442695
        %v288 = vpow.pop %v287
        %v289 = vld [vmem:[#allocation3] sm:$0xff]
        %v291 = vlaneseq
        %v292 = vshrl.u32 %v291, 7
        %v293 = vsub.s32 0, %v292
        %v294 = vrot.slane %v278, %v293
        %v296 = vmul.f32 %v289, %v294
        %v297 = vadd.f32 %v296, %v288
        %298 = vst [vmem:[#allocation3] sm:$0xff] %v297
        // Predicated region
        $region41: #{tpu_custom_call.1} parent=27 // pred_check
          %p299 = pneg %p223
        $region42: #{tpu_custom_call.1} parent=27 // pred_check_branch
          %301 = sbr.rel (%p299) target = $region44
        $region43: #{tpu_custom_call.1} parent=27 // pred_region
          %v302 = vld [vmem:[#allocation3] sm:$0xff]
          %v303 = vrot.slane %v302, 4
          %v304 = vadd.f32 %v302, %v303
          %v305 = vrot.slane %v304, 2
          %v306 = vadd.f32 %v304, %v305
          %v307 = vrot.slane %v306, 1
          %v308 = vadd.f32 %v306, %v307
          %v309 = vld [vmem:[#allocation2] sm:$0x1]
          %v310 = vmul.f32 %v308, 0.0625
          %v311 = vlog2.pop %v310
          %v312 = vmul.f32 %v311, 0.6931472
          %v313 = vadd.f32 %v309, %v312
          %v314 = vmul.f32 %v313, 0.6666667
          %v315 = vadd.f32 %v314, 0.0
          %316 = vst [vmem:[%s220] sm:$0x1] %v315
        $region44: #{tpu_custom_call.1} parent=27 // pred_fallthru
          _
        %s317 = sand.u32 %s98, 1
        %s318 = scalar_lea.sflag [#allocation6], %s317
        %s319 = sand.u32 %s98, 1
        %s320 = scalar_lea.vmem [#allocation9], %s319
        // Predicated region
        $region45: #{tpu_custom_call.1} parent=27 // pred_check
          %p321 = pneg %p108
        $region46: #{tpu_custom_call.1} parent=27 // pred_check_branch
          %323 = sbr.rel (%p321) target = $region48
        $region47: #{tpu_custom_call.1} parent=27 // pred_region
          %s325 = ssub.s32 16, 16
          %326 = vsyncadd %s318, %s325
          %s327 = smul.addr %s26, 16
          %s328 = scalar_lea.hbm %s2, %s327
          %s330 = sshll.u32 %s320, 4
          %s331 = int_to_ptr.vmem [resolvable:$true] %s330
          %333 = dma.vmem_to_hbm [thread:$0]  %s331, 16, %s328, %s318
        $region48: #{tpu_custom_call.1} parent=27 // pred_fallthru
          _
      $region28: #{tpu_custom_call.1} parent=5 // pred_fallthru
        _
      %p334 = scmp.le.s32.totalorder 2, %s17
      // Predicated region
      $region49: #{tpu_custom_call.1} parent=5 // pred_check
        %p335 = pneg %p334
      $region50: #{tpu_custom_call.1} parent=5 // pred_check_branch
        %337 = sbr.rel (%p335) target = $region52
      $region51: #{tpu_custom_call.1} parent=5 // pred_region
        %s338 = ssub.s32 %s17, 2
        // Predicated region
        $region53: #{tpu_custom_call.1} parent=51 // pred_check
          %p339 = pneg %p114
        $region54: #{tpu_custom_call.1} parent=51 // pred_check_branch
          %341 = sbr.rel (%p339) target = $region56
        $region55: #{tpu_custom_call.1} parent=51 // pred_region
          %s342 = sand.u32 %s99, 1
          %s343 = scalar_lea.sflag [#allocation6], %s342
          %s344 = sand.u32 %s99, 1
          %s345 = scalar_lea.vmem [#allocation9], %s344
          %346 = dma.done %s343, 16
        $region56: #{tpu_custom_call.1} parent=51 // pred_fallthru
          _
      $region52: #{tpu_custom_call.1} parent=5 // pred_fallthru
        _
    $region6: #{tpu_custom_call.1} parent=1 // loop_footer
      %s21 = sadd.s32 1, %s17
    $region7: #{tpu_custom_call.1} parent=1 // loop_footer_branch
      %16 = sbr.rel target = $region3
    $region8: #{tpu_custom_call.1} parent=1 // loop_exit
      _
    %347 = vsyncpa [#allocation5], 1
    %s348 = scalar_lea.sflag [#allocation5], 1
    %349 = vsyncpa %s348, 1
    %350 = vsyncpa [#allocation8], 1
    %s351 = scalar_lea.sflag [#allocation8], 1
    %352 = vsyncpa %s351, 1
    %353 = vsyncpa [#allocation6], 1
    %s354 = scalar_lea.sflag [#allocation6], 1
    %355 = vsyncpa %s354, 1

</llo_original>
